<compile_context>
chip_gen: v7x
topology: tpu7x:2x2x1
jax: 0.10.0
libtpu: 0.0.40
codegen_flags: <defaults>
</compile_context>

<pallas_src>
import numpy as np
import jax
import jax.numpy as jnp
from jax.experimental import pallas as pl
from jax.experimental.pallas import tpu as pltpu


# ---------------------------------------------------------------------------
# Host-side glue: build the per-level linear operators (avg-pool + bilinear).
# ---------------------------------------------------------------------------
def _avg_pool_matrix(size: int, k: int) -> np.ndarray:
    """(out, size) matrix implementing 1-D avg_pool with kernel=stride=k, pad=0."""
    out = (size - k) // k + 1
    P = np.zeros((out, size), dtype=np.float64)
    for p in range(out):
        P[p, p * k:p * k + k] = 1.0 / k
    return P


def _bilinear_upsample_matrix(out_size: int, in_size: int) -> np.ndarray:
    """(out_size, in_size) matrix for 1-D bilinear resize, align_corners=False
    (the behavior of F.upsample/F.interpolate when align_corners is not given)."""
    W = np.zeros((out_size, in_size), dtype=np.float64)
    if in_size == 1:
        W[:, 0] = 1.0
        return W
    scale = in_size / out_size
    for d in range(out_size):
        src = max((d + 0.5) * scale - 0.5, 0.0)      # PyTorch clamps negative coords
        i0 = min(int(np.floor(src)), in_size - 1)
        i1 = min(i0 + 1, in_size - 1)
        lam = src - i0
        W[d, i0] += 1.0 - lam
        W[d, i1] += lam
    return W


def _level_matrices_np(h: int, w: int, pool_sizes):
    """Per-level A_l (h,h) and B_l (w,w) so that level_l(X) = A_l @ X @ B_l^T."""
    A_list, B_list = [], []
    for p in pool_sizes:
        kh, kw = int(h / p), int(w / p)
        Ph = _avg_pool_matrix(h, kh)                      # (ph, h)
        Pw = _avg_pool_matrix(w, kw)                      # (pw, w)
        Uh = _bilinear_upsample_matrix(h, Ph.shape[0])    # (h, ph)
        Uw = _bilinear_upsample_matrix(w, Pw.shape[0])    # (w, pw)
        A_list.append(Uh @ Ph)                            # (h, h)
        B_list.append(Uw @ Pw)                            # (w, w)
    return A_list, B_list


def _fused_operator_T(h: int, w: int, pool_sizes) -> jax.Array:
    """M^T with M = I + sum_l kron(A_l, B_l); out_flat = x_flat @ M^T."""
    A_list, B_list = _level_matrices_np(h, w, pool_sizes)
    hw = h * w
    M = np.eye(hw, dtype=np.float64)
    for A, B in zip(A_list, B_list):
        M += np.kron(A, B)        # [p*w+q, r*w+c] = A[p,r] * B[q,c]
    return jnp.asarray(M.T.astype(np.float32))            # (hw, hw)


# ---------------------------------------------------------------------------
# Pallas kernels.
# ---------------------------------------------------------------------------
def _spp_fused_kernel(x_ref, mt_ref, o_ref):
    """out = x @ M^T  — one lane-dense MXU matmul per NC tile."""
    x = x_ref[...].astype(jnp.float32)                      # (tile_nc, hw)
    y = jnp.dot(x, mt_ref[...], preferred_element_type=jnp.float32)
    o_ref[...] = y.astype(o_ref.dtype)


def _spp_two_sided_kernel(x_ref, a_ref, bt_ref, o_ref):
    """Fallback for large spatial sizes: acc = x + sum_l A_l @ x @ B_l^T.

    Transposes are hoisted out of the level loop; each contraction is a single
    fat lane-dense 2-D matmul (no batched tiny dots).
    """
    x = x_ref[...].astype(jnp.float32)                      # (tile_nc, h, w)
    tile_nc, h, w = x.shape
    num_levels = a_ref.shape[0]
    # Accumulate in (h, tile_nc*w) layout; transpose in/out exactly once.
    x_hm = jnp.transpose(x, (1, 0, 2)).reshape(h, tile_nc * w)
    acc = x_hm
    for l in range(num_levels):                             # small static loop
        tmp = jnp.dot(a_ref[l], x_hm,
                      preferred_element_type=jnp.float32)   # (h, tile_nc*w)
        lvl = jnp.dot(tmp.reshape(h * tile_nc, w), bt_ref[l],
                      preferred_element_type=jnp.float32)   # (h*tile_nc, w)
        acc = acc + lvl.reshape(h, tile_nc * w)
    out = jnp.transpose(acc.reshape(h, tile_nc, w), (1, 0, 2))
    o_ref[...] = out.astype(o_ref.dtype)


# ---------------------------------------------------------------------------
# Wrapper.
# ---------------------------------------------------------------------------
_TARGET_BLOCK_BYTES = 2 << 20           # ~2 MiB per input block: near HBM roofline,
                                        # and 2*(in)+2*(out)+operators fits easily
_VMEM_LIMIT_BYTES = 32 * 1024 * 1024    # inside v7x's 32 MiB scoped VMEM.
_FUSED_HW_LIMIT = 1024                  # use fused (H*W)^2 operator up to here.


def _round_up(x: int, m: int) -> int:
    return (x + m - 1) // m * m


def _choose_tile_nc(nc: int, row_elems: int, itemsize: int) -> int:
    """Largest multiple-of-8 NC tile whose block stays under the byte target."""
    bytes_per_row = row_elems * max(int(itemsize), 4)
    cap = max(8, ((_TARGET_BLOCK_BYTES // bytes_per_row) // 8) * 8)
    return int(min(_round_up(nc, 8), cap))


def spatial_pyramid_pooling(x: jax.Array, pool_sizes=(1, 2, 4)) -> jax.Array:
    """x: NCHW float array. Returns x + sum of pooled+bilinear-upsampled pyramids."""
    n, c, h, w = x.shape
    nc, hw = n * c, h * w
    compiler_params = pltpu.CompilerParams(
        dimension_semantics=("parallel",),        # NC grid -> v7x megacore sharding
        vmem_limit_bytes=_VMEM_LIMIT_BYTES,
    )

    if hw <= _FUSED_HW_LIMIT:
        # ---- Fused path: single (tile_nc, hw) @ (hw, hw) matmul per grid step.
        mt = _fused_operator_T(h, w, pool_sizes)            # (hw, hw) f32, resident
        x2 = x.reshape(nc, hw)                              # lane-dense layout
        tile_nc = _choose_tile_nc(nc, hw, x.dtype.itemsize)
        nc_pad = _round_up(nc, tile_nc)
        if nc_pad != nc:
            x2 = jnp.pad(x2, ((0, nc_pad - nc), (0, 0)))
        out2 = pl.pallas_call(
            _spp_fused_kernel,
            out_shape=jax.ShapeDtypeStruct((nc_pad, hw), x.dtype),
            grid=(nc_pad // tile_nc,),
            in_specs=[
                pl.BlockSpec((tile_nc, hw), lambda i: (i, 0)),
                pl.BlockSpec((hw, hw), lambda i: (0, 0)),    # grid-invariant: DMA'd once
            ],
            out_specs=pl.BlockSpec((tile_nc, hw), lambda i: (i, 0)),
            compiler_params=compiler_params,
        )(x2, mt)
        if nc_pad != nc:
            out2 = out2[:nc]
        return out2.reshape(n, c, h, w)

    # ---- Two-sided fallback for large spatial sizes.
    A_list, B_list = _level_matrices_np(h, w, pool_sizes)
    A = jnp.asarray(np.stack(A_list).astype(np.float32))            # (L, h, h)
    BT = jnp.asarray(np.stack([b.T for b in B_list]).astype(np.float32))  # (L, w, w)
    L = A.shape[0]
    x3 = x.reshape(nc, h, w)
    tile_nc = _choose_tile_nc(nc, hw, x.dtype.itemsize)
    nc_pad = _round_up(nc, tile_nc)
    if nc_pad != nc:
        x3 = jnp.pad(x3, ((0, nc_pad - nc), (0, 0), (0, 0)))
    out3 = pl.pallas_call(
        _spp_two_sided_kernel,
        out_shape=jax.ShapeDtypeStruct((nc_pad, h, w), x.dtype),
        grid=(nc_pad // tile_nc,),
        in_specs=[
            pl.BlockSpec((tile_nc, h, w), lambda i: (i, 0, 0)),
            pl.BlockSpec((L, h, h), lambda i: (0, 0, 0)),            # resident
            pl.BlockSpec((L, w, w), lambda i: (0, 0, 0)),            # resident
        ],
        out_specs=pl.BlockSpec((tile_nc, h, w), lambda i: (i, 0, 0)),
        compiler_params=compiler_params,
    )(x3, A, BT)
    if nc_pad != nc:
        out3 = out3[:nc]
    return out3.reshape(n, c, h, w)


# ---------------------------------------------------------------------------
# Pure-JAX reference (per-level linear-operator form) for a sanity check.
# ---------------------------------------------------------------------------
def _reference(x, pool_sizes=(1, 2, 4)):
    A_list, B_list = _level_matrices_np(*x.shape[2:], pool_sizes)
    acc = x.astype(jnp.float32)
    xf = x.astype(jnp.float32)
    for A, B in zip(A_list, B_list):
        acc = acc + jnp.einsum('ph,nchw,qw->ncpq',
                               jnp.asarray(A.astype(np.float32)), xf,
                               jnp.asarray(B.astype(np.float32)))
    return acc.astype(x.dtype)


if __name__ == "__main__":
    key = jax.random.PRNGKey(0)
    x = jax.random.normal(key, (2, 4, 16, 16), dtype=jnp.float32)   # NCHW
    pool_sizes = (1, 2, 4)

    out = spatial_pyramid_pooling(x, pool_sizes)
    out = jax.block_until_ready(out)

    ref = _reference(x, pool_sizes)
    np.testing.assert_allclose(np.asarray(out), np.asarray(ref), rtol=1e-4, atol=1e-4)

    print("KERNEL_OK")
</pallas_src>

<mosaic_0001>
module attributes {stable_mosaic.version = 11 : i64} {
  func.func @_spp_fused_kernel(%arg0: i32, %arg1: memref<8x256xf32, #tpu.memory_space<vmem>>, %arg2: memref<256x256xf32, #tpu.memory_space<vmem>>, %arg3: memref<8x256xf32, #tpu.memory_space<vmem>>) attributes {dimension_semantics = [#tpu.dimension_semantics<parallel>], iteration_bounds = array<i64: 1>, scalar_prefetch = 0 : i64, scratch_operands = 0 : i64, tpu.core_type = #tpu.core_type<tc>, window_params = [{transform_indices = @transform_0, window_bounds = array<i64: 8, 256>}, {pipeline_mode = #tpu.pipeline_mode<synchronous>, transform_indices = @transform_1, window_bounds = array<i64: 256, 256>}, {transform_indices = @transform_2, window_bounds = array<i64: 8, 256>}]} {
    %c0 = arith.constant 0 : index
    %c0_0 = arith.constant 0 : index
    %0 = vector.load %arg1[%c0, %c0_0] : memref<8x256xf32, #tpu.memory_space<vmem>>, vector<8x256xf32>
    %c0_1 = arith.constant 0 : index
    %c0_2 = arith.constant 0 : index
    %1 = vector.load %arg2[%c0_1, %c0_2] : memref<256x256xf32, #tpu.memory_space<vmem>>, vector<256x256xf32>
    %cst = arith.constant dense<0.000000e+00> : vector<8x256xf32>
    %2 = tpu.matmul %0, %1, %cst {dimension_numbers = #tpu.dot_dimension_numbers<[1], [0], [0], [1], [0, 0, 1, 1], [], []>} : vector<8x256xf32>, vector<256x256xf32>, vector<8x256xf32> -> vector<8x256xf32>
    %c0_3 = arith.constant 0 : index
    %c0_4 = arith.constant 0 : index
    %3 = vector.load %arg3[%c0_3, %c0_4] : memref<8x256xf32, #tpu.memory_space<vmem>>, vector<8x256xf32>
    tpu.vector_store %arg3[%c0_3, %c0_4], %2 {strides = array<i32>} : memref<8x256xf32, #tpu.memory_space<vmem>>, vector<8x256xf32>,
    return
  }
  func.func @transform_0(%arg0: i32) -> (i32, i32) {
    %c0_i32 = arith.constant 0 : i32
    %c0_i32_0 = arith.constant 0 : i32
    return %arg0, %c0_i32 : i32, i32
  }
  func.func @transform_1(%arg0: i32) -> (i32, i32) {
    %c0_i32 = arith.constant 0 : i32
    %c0_i32_0 = arith.constant 0 : i32
    %c0_i32_1 = arith.constant 0 : i32
    return %c0_i32, %c0_i32_0 : i32, i32
  }
  func.func @transform_2(%arg0: i32) -> (i32, i32) {
    %c0_i32 = arith.constant 0 : i32
    %c0_i32_0 = arith.constant 0 : i32
    return %arg0, %c0_i32 : i32, i32
  }
}

</mosaic_0001>

<llo_original>
// kernel: tpu_custom_call.1
$region0: #{tpu_custom_call.1}
  #allocation0 [shape = 'u32[]', space=smem, size = 0x4, offset = 0x4, fixed_abs, tag = 'smem constant byte address 0x4 - core index']
  #allocation1 [shape = 'u32[144,128]{1,0:T(1,128)}', space=vmem, size = 0x12000, scoped, tag = 'internal scratch']
  %s0 = inlined_call_operand.hbm [shape: f32[8,256], index: 0, kind: input, shape index: {}]
  %s1 = inlined_call_operand.hbm [shape: f32[256,256], index: 1, kind: input, shape index: {}]
  %s2 = inlined_call_operand.hbm [shape: f32[8,256], index: 2, kind: output, shape index: {}]
  %s3 = sld [smem:[#allocation0]]
  $region26: #{tpu_custom_call.1} parent=0
    _
  %s5 = ssub.s32 1, %s3
  %s6 = scalar_select 0, %s5, %s3
  $region1: #{tpu_custom_call.1} parent=0
    #allocation2 [shape = 'u8[8192]{0}', space=vmem, size = 0x2000, scoped, tag = 'input window, operand 0, single buffered']
    #allocation3 [shape = 's32[1]{0}', space=sflag, size = 0x4, scoped, tag = 'scoped memory for tpu_custom_call.1']
    #allocation4 [shape = 's32[1]{0}', space=sflag, size = 0x4, scoped, tag = 'scoped memory for tpu_custom_call.1']
    #allocation5 [shape = 'u8[262144]{0}', space=vmem, size = 0x40000, scoped, tag = 'input window, operand 1, single buffered']
    #allocation6 [shape = 's32[1]{0}', space=sflag, size = 0x4, scoped, tag = 'scoped memory for tpu_custom_call.1']
    #allocation7 [shape = 'u8[8192]{0}', space=vmem, size = 0x2000, scoped, tag = 'output window, operand 0, single buffered']
    %7 = vsyncpa [#allocation3], 0
    %8 = vsyncpa [#allocation6], 0
    %9 = vsyncpa [#allocation4], 0
    // Predicated region
    $region2: #{tpu_custom_call.1} parent=1 // pred_check
      _
    $region3: #{tpu_custom_call.1} parent=1 // pred_check_branch
      %11 = sbr.rel (0) target = $region5
    $region4: #{tpu_custom_call.1} parent=1 // pred_region
      %s13 = ssub.s32 256, 256
      %14 = vsyncadd [#allocation3], %s13
      %s16 = sshll.u32 [#allocation2], 4
      %s17 = int_to_ptr.vmem [resolvable:$true] %s16
      %19 = dma.hbm_to_vmem [thread:$0]  %s0, 256, %s17, [#allocation3]
    $region5: #{tpu_custom_call.1} parent=1 // pred_fallthru
      _
    // Predicated region
    $region6: #{tpu_custom_call.1} parent=1 // pred_check
      _
    $region7: #{tpu_custom_call.1} parent=1 // pred_check_branch
      %21 = sbr.rel (0) target = $region9
    $region8: #{tpu_custom_call.1} parent=1 // pred_region
      %s23 = ssub.s32 8192, 8192
      %24 = vsyncadd [#allocation6], %s23
      %s25 = sshll.u32 [#allocation5], 4
      %s26 = int_to_ptr.vmem [resolvable:$true] %s25
      %31 = dma.hbm_to_vmem [thread:$0]  %s1, 8192, %s26, [#allocation6], 256, 256, 16
    $region9: #{tpu_custom_call.1} parent=1 // pred_fallthru
      _
    // Predicated region
    $region10: #{tpu_custom_call.1} parent=1 // pred_check
      _
    $region11: #{tpu_custom_call.1} parent=1 // pred_check_branch
      %33 = sbr.rel (0) target = $region13
    $region12: #{tpu_custom_call.1} parent=1 // pred_region
      %34 = dma.done [#allocation3], 256
    $region13: #{tpu_custom_call.1} parent=1 // pred_fallthru
      _
    // Predicated region
    $region14: #{tpu_custom_call.1} parent=1 // pred_check
      _
    $region15: #{tpu_custom_call.1} parent=1 // pred_check_branch
      %36 = sbr.rel (0) target = $region17
    $region16: #{tpu_custom_call.1} parent=1 // pred_region
      %37 = dma.done [#allocation6], 8192
    $region17: #{tpu_custom_call.1} parent=1 // pred_fallthru
      _
    %v38 = vld [vmem:[#allocation2] sm:$0xff]
    %v39 = vld [vmem:[#allocation2 + $0x8] sm:$0xff]
    %v40 = vld [vmem:[#allocation5] sm:$0xff]
    %v41 = vld [vmem:[#allocation5 + $0x8] sm:$0xff]
    %v42 = vld [vmem:[#allocation5 + $0x10] sm:$0xff]
    %v43 = vld [vmem:[#allocation5 + $0x18] sm:$0xff]
    %v44 = vld [vmem:[#allocation5 + $0x20] sm:$0xff]
    %v45 = vld [vmem:[#allocation5 + $0x28] sm:$0xff]
    %v46 = vld [vmem:[#allocation5 + $0x30] sm:$0xff]
    %v47 = vld [vmem:[#allocation5 + $0x38] sm:$0xff]
    %v48 = vld [vmem:[#allocation5 + $0x40] sm:$0xff]
    %v49 = vld [vmem:[#allocation5 + $0x48] sm:$0xff]
    %v50 = vld [vmem:[#allocation5 + $0x50] sm:$0xff]
    %v51 = vld [vmem:[#allocation5 + $0x58] sm:$0xff]
    %v52 = vld [vmem:[#allocation5 + $0x60] sm:$0xff]
    %v53 = vld [vmem:[#allocation5 + $0x68] sm:$0xff]
    %v54 = vld [vmem:[#allocation5 + $0x70] sm:$0xff]
    %v55 = vld [vmem:[#allocation5 + $0x78] sm:$0xff]
    %v56 = vld [vmem:[#allocation5 + $0x80] sm:$0xff]
    %v57 = vld [vmem:[#allocation5 + $0x88] sm:$0xff]
    %v58 = vld [vmem:[#allocation5 + $0x90] sm:$0xff]
    %v59 = vld [vmem:[#allocation5 + $0x98] sm:$0xff]
    %v60 = vld [vmem:[#allocation5 + $0xa0] sm:$0xff]
    %v61 = vld [vmem:[#allocation5 + $0xa8] sm:$0xff]
    %v62 = vld [vmem:[#allocation5 + $0xb0] sm:$0xff]
    %v63 = vld [vmem:[#allocation5 + $0xb8] sm:$0xff]
    %v64 = vld [vmem:[#allocation5 + $0xc0] sm:$0xff]
    %v65 = vld [vmem:[#allocation5 + $0xc8] sm:$0xff]
    %v66 = vld [vmem:[#allocation5 + $0xd0] sm:$0xff]
    %v67 = vld [vmem:[#allocation5 + $0xd8] sm:$0xff]
    %v68 = vld [vmem:[#allocation5 + $0xe0] sm:$0xff]
    %v69 = vld [vmem:[#allocation5 + $0xe8] sm:$0xff]
    %v70 = vld [vmem:[#allocation5 + $0xf0] sm:$0xff]
    %v71 = vld [vmem:[#allocation5 + $0xf8] sm:$0xff]
    %v72 = vld [vmem:[#allocation5 + $0x100] sm:$0xff]
    %v73 = vld [vmem:[#allocation5 + $0x108] sm:$0xff]
    %v74 = vld [vmem:[#allocation5 + $0x110] sm:$0xff]
    %v75 = vld [vmem:[#allocation5 + $0x118] sm:$0xff]
    %v76 = vld [vmem:[#allocation5 + $0x120] sm:$0xff]
    %v77 = vld [vmem:[#allocation5 + $0x128] sm:$0xff]
    %v78 = vld [vmem:[#allocation5 + $0x130] sm:$0xff]
    %v79 = vld [vmem:[#allocation5 + $0x138] sm:$0xff]
    %v80 = vld [vmem:[#allocation5 + $0x140] sm:$0xff]
    %v81 = vld [vmem:[#allocation5 + $0x148] sm:$0xff]
    %v82 = vld [vmem:[#allocation5 + $0x150] sm:$0xff]
    %v83 = vld [vmem:[#allocation5 + $0x158] sm:$0xff]
    %v84 = vld [vmem:[#allocation5 + $0x160] sm:$0xff]
    %v85 = vld [vmem:[#allocation5 + $0x168] sm:$0xff]
    %v86 = vld [vmem:[#allocation5 + $0x170] sm:$0xff]
    %v87 = vld [vmem:[#allocation5 + $0x178] sm:$0xff]
    %v88 = vld [vmem:[#allocation5 + $0x180] sm:$0xff]
    %v89 = vld [vmem:[#allocation5 + $0x188] sm:$0xff]
    %v90 = vld [vmem:[#allocation5 + $0x190] sm:$0xff]
    %v91 = vld [vmem:[#allocation5 + $0x198] sm:$0xff]
    %v92 = vld [vmem:[#allocation5 + $0x1a0] sm:$0xff]
    %v93 = vld [vmem:[#allocation5 + $0x1a8] sm:$0xff]
    %v94 = vld [vmem:[#allocation5 + $0x1b0] sm:$0xff]
    %v95 = vld [vmem:[#allocation5 + $0x1b8] sm:$0xff]
    %v96 = vld [vmem:[#allocation5 + $0x1c0] sm:$0xff]
    %v97 = vld [vmem:[#allocation5 + $0x1c8] sm:$0xff]
    %v98 = vld [vmem:[#allocation5 + $0x1d0] sm:$0xff]
    %v99 = vld [vmem:[#allocation5 + $0x1d8] sm:$0xff]
    %v100 = vld [vmem:[#allocation5 + $0x1e0] sm:$0xff]
    %v101 = vld [vmem:[#allocation5 + $0x1e8] sm:$0xff]
    %v102 = vld [vmem:[#allocation5 + $0x1f0] sm:$0xff]
    %v103 = vld [vmem:[#allocation5 + $0x1f8] sm:$0xff]
    %104 = vmatprep.subr.mxu0 %v41
    %105 = vmatpush1.msra.mxu0 %v40
    %106 = vmatprep.subr.mxu0 %v43
    %107 = vmatpush1.msra.mxu0 %v42
    %108 = vmatprep.subr.mxu0 %v45
    %109 = vmatpush1.msra.mxu0 %v44
    %110 = vmatprep.subr.mxu0 %v47
    %111 = vmatpush1.msra.mxu0 %v46
    %112 = vmatprep.subr.mxu0 %v49
    %113 = vmatpush1.msra.mxu0 %v48
    %114 = vmatprep.subr.mxu0 %v51
    %115 = vmatpush1.msra.mxu0 %v50
    %116 = vmatprep.subr.mxu0 %v53
    %117 = vmatpush1.msra.mxu0 %v52
    %118 = vmatprep.subr.mxu0 %v55
    %119 = vmatpush1.msra.mxu0 %v54
    %120 = vmatprep.subr.mxu0 %v57
    %121 = vmatpush1.msra.mxu0 %v56
    %122 = vmatprep.subr.mxu0 %v59
    %123 = vmatpush1.msra.mxu0 %v58
    %124 = vmatprep.subr.mxu0 %v61
    %125 = vmatpush1.msra.mxu0 %v60
    %126 = vmatprep.subr.mxu0 %v63
    %127 = vmatpush1.msra.mxu0 %v62
    %128 = vmatprep.subr.mxu0 %v65
    %129 = vmatpush1.msra.mxu0 %v64
    %130 = vmatprep.subr.mxu0 %v67
    %131 = vmatpush1.msra.mxu0 %v66
    %132 = vmatprep.subr.mxu0 %v69
    %133 = vmatpush1.msra.mxu0 %v68
    %134 = vmatprep.subr.mxu0 %v71
    %135 = vmatpush1.msra.mxu0 %v70
    %136 = vmatprep.subr.mxu0 %v73
    %137 = vmatpush1.msra.mxu0 %v72
    %138 = vmatprep.subr.mxu0 %v75
    %139 = vmatpush1.msra.mxu0 %v74
    %140 = vmatprep.subr.mxu0 %v77
    %141 = vmatpush1.msra.mxu0 %v76
    %142 = vmatprep.subr.mxu0 %v79
    %143 = vmatpush1.msra.mxu0 %v78
    %144 = vmatprep.subr.mxu0 %v81
    %145 = vmatpush1.msra.mxu0 %v80
    %146 = vmatprep.subr.mxu0 %v83
    %147 = vmatpush1.msra.mxu0 %v82
    %148 = vmatprep.subr.mxu0 %v85
    %149 = vmatpush1.msra.mxu0 %v84
    %150 = vmatprep.subr.mxu0 %v87
    %151 = vmatpush1.msra.mxu0 %v86
    %152 = vmatprep.subr.mxu0 %v89
    %153 = vmatpush1.msra.mxu0 %v88
    %154 = vmatprep.subr.mxu0 %v91
    %155 = vmatpush1.msra.mxu0 %v90
    %156 = vmatprep.subr.mxu0 %v93
    %157 = vmatpush1.msra.mxu0 %v92
    %158 = vmatprep.subr.mxu0 %v95
    %159 = vmatpush1.msra.mxu0 %v94
    %160 = vmatprep.subr.mxu0 %v97
    %161 = vmatpush1.msra.mxu0 %v96
    %162 = vmatprep.subr.mxu0 %v99
    %163 = vmatpush1.msra.mxu0 %v98
    %164 = vmatprep.subr.mxu0 %v101
    %165 = vmatpush1.msra.mxu0 %v100
    %166 = vmatprep.subr.mxu0 %v103
    %167 = vmatpush1.msra.mxu0 %v102
    %168 = vmatprep.mubr.f32.mxu0 %v39
    %169 = vmatmul.mubr.f32.gmra.mrb[0].mxu0 %v38
    %v170 = vpop.f32.mrb[0].mxu0
    %v171 = vadd.f32 0.0, %v170
    %v172 = vpop.f32.mrb[0].mxu0
    %v173 = vadd.f32 0.0, %v172
    %174 = vdwg.mxu0
    %175 = vst [vmem:[#allocation7] sm:$0xff] %v171
    %176 = vst [vmem:[#allocation7 + $0x8] sm:$0xff] %v173
    // Predicated region
    $region18: #{tpu_custom_call.1} parent=1 // pred_check
      _
    $region19: #{tpu_custom_call.1} parent=1 // pred_check_branch
      %178 = sbr.rel (0) target = $region21
    $region20: #{tpu_custom_call.1} parent=1 // pred_region
      %s180 = ssub.s32 256, 256
      %181 = vsyncadd [#allocation4], %s180
      %s183 = sshll.u32 [#allocation7], 4
      %s184 = int_to_ptr.vmem [resolvable:$true] %s183
      %186 = dma.vmem_to_hbm [thread:$0]  %s184, 256, %s2, [#allocation4]
    $region21: #{tpu_custom_call.1} parent=1 // pred_fallthru
      _
    // Predicated region
    $region22: #{tpu_custom_call.1} parent=1 // pred_check
      _
    $region23: #{tpu_custom_call.1} parent=1 // pred_check_branch
      %188 = sbr.rel (0) target = $region25
    $region24: #{tpu_custom_call.1} parent=1 // pred_region
      %189 = dma.done [#allocation4], 256
    $region25: #{tpu_custom_call.1} parent=1 // pred_fallthru
      _
    %190 = vsyncpa [#allocation3], 1
    %191 = vsyncpa [#allocation6], 1
    %192 = vsyncpa [#allocation4], 1

</llo_original>
